<compile_context>
chip_gen: v7x
topology: tpu7x:2x2x1
jax: 0.10.0
libtpu: 0.0.40
codegen_flags: <defaults>
</compile_context>

<pallas_src>
import functools
import math

import jax
import jax.numpy as jnp
from jax.experimental import pallas as pl
from jax.experimental.pallas import tpu as pltpu

LN_EPS = 1e-5
NEG_INF = -1e9
ACT_DTYPE = jnp.bfloat16          # MXU-native activation/weight dtype; accumulate in f32.

# Tile caps (review: 512 was over-conservative; 1024 tiles fit v7x's 64 MiB easily).
TM_CAP = 1024                     # row (sublane) tile cap for matmuls
TN_CAP = 1024                     # output-lane tile cap
TK_CAP = 1024                     # contraction tile cap (=> full-K single pass for K<=1024)
ATTN_TQ_CAP = 512                 # attention query-block rows
ATTN_TKV_CAP = 512                # attention key/value-block rows


def _vmem_capacity_bytes():
    try:
        info = pltpu.get_tpu_info()
        for attr in ("vmem_capacity_bytes", "vmem_size_bytes", "vmem_bytes"):
            v = getattr(info, attr, None)
            if v:
                return int(v)
    except Exception:
        pass
    return 64 * 1024 * 1024       # conservative (v7x-sized) fallback


# Generation-aware budgets: v5e/v6e have 128 MiB VMEM per TC, v7x has 64 MiB.
if _vmem_capacity_bytes() >= 100 * 1024 * 1024:
    VMEM_LIMIT = 96 * 1024 * 1024
    LN_ROWS_CAP = 2048
else:
    VMEM_LIMIT = 48 * 1024 * 1024
    LN_ROWS_CAP = 1024


def _tile_sublane(dim, cap):
    cap = min(cap, dim)
    for t in range(cap, 0, -1):
        if dim % t == 0 and (t % 8 == 0 or t == dim):
            return t
    return dim


def _tile_lane(dim, cap):
    cap = min(cap, dim)
    for t in range(cap, 0, -1):
        if dim % t == 0 and (t % 128 == 0 or t == dim):
            return t
    return dim


def _round_up(x, m):
    return ((x + m - 1) // m) * m


def _gelu(y):
    # TODO(synk): HF RoBERTa uses exact erf-GELU; tanh approximation used here.
    return 0.5 * y * (1.0 + jnp.tanh(0.7978845608028654 * (y + 0.044715 * y * y * y)))


# --------------------------- linear (matmul + bias [+ GELU]) ----------------

def _linear_kernel(x_ref, w_ref, b_ref, o_ref, acc_ref, *, activation):
    @pl.when(pl.program_id(2) == 0)
    def _():
        acc_ref[...] = jnp.zeros_like(acc_ref)

    acc_ref[...] += jnp.dot(x_ref[...], w_ref[...],
                            preferred_element_type=jnp.float32)

    @pl.when(pl.program_id(2) == pl.num_programs(2) - 1)
    def _():
        y = acc_ref[...] + b_ref[...]
        if activation == "gelu":
            y = _gelu(y)
        o_ref[...] = y.astype(o_ref.dtype)


def linear(x, w, b, activation=None, out_dtype=ACT_DTYPE):
    M, K = x.shape
    _, N = w.shape
    tm = _tile_sublane(M, TM_CAP)
    tn = _tile_lane(N, TN_CAP)
    tk = _tile_lane(K, TK_CAP)
    kernel = functools.partial(_linear_kernel, activation=activation)
    return pl.pallas_call(
        kernel,
        out_shape=jax.ShapeDtypeStruct((M, N), out_dtype),
        grid=(M // tm, N // tn, K // tk),
        in_specs=[pl.BlockSpec((tm, tk), lambda i, j, k: (i, k)),
                  pl.BlockSpec((tk, tn), lambda i, j, k: (k, j)),
                  pl.BlockSpec((1, tn), lambda i, j, k: (0, j))],
        out_specs=pl.BlockSpec((tm, tn), lambda i, j, k: (i, j)),
        scratch_shapes=[pltpu.VMEM((tm, tn), jnp.float32)],
        compiler_params=pltpu.CompilerParams(
            dimension_semantics=("parallel", "parallel", "arbitrary"),
            vmem_limit_bytes=VMEM_LIMIT),
    )(x.astype(ACT_DTYPE), w.astype(ACT_DTYPE),
      b.reshape(1, N).astype(jnp.float32))


# ------------------- linear + residual-add + LayerNorm (fused) --------------

def _linear_res_ln_kernel(x_ref, w_ref, b_ref, r_ref, g_ref, bln_ref, o_ref, acc_ref):
    @pl.when(pl.program_id(1) == 0)
    def _():
        acc_ref[...] = jnp.zeros_like(acc_ref)

    acc_ref[...] += jnp.dot(x_ref[...], w_ref[...],
                            preferred_element_type=jnp.float32)

    @pl.when(pl.program_id(1) == pl.num_programs(1) - 1)
    def _():
        y = acc_ref[...] + b_ref[...] + r_ref[...].astype(jnp.float32)
        mu = jnp.mean(y, axis=-1, keepdims=True)
        var = jnp.mean(jnp.square(y - mu), axis=-1, keepdims=True)
        yn = (y - mu) * jax.lax.rsqrt(var + LN_EPS)
        o_ref[...] = (yn * g_ref[...] + bln_ref[...]).astype(o_ref.dtype)


def linear_residual_layernorm(x, w, b, residual, gamma, beta):
    """out = LayerNorm(x @ w + b + residual). Full output row (tn = N) per tile."""
    M, K = x.shape
    _, N = w.shape
    tm = _tile_sublane(M, TM_CAP)
    tk = _tile_lane(K, TK_CAP)
    return pl.pallas_call(
        _linear_res_ln_kernel,
        out_shape=jax.ShapeDtypeStruct((M, N), ACT_DTYPE),
        grid=(M // tm, K // tk),
        in_specs=[pl.BlockSpec((tm, tk), lambda i, k: (i, k)),
                  pl.BlockSpec((tk, N), lambda i, k: (k, 0)),
                  pl.BlockSpec((1, N), lambda i, k: (0, 0)),
                  pl.BlockSpec((tm, N), lambda i, k: (i, 0)),
                  pl.BlockSpec((1, N), lambda i, k: (0, 0)),
                  pl.BlockSpec((1, N), lambda i, k: (0, 0))],
        out_specs=pl.BlockSpec((tm, N), lambda i, k: (i, 0)),
        scratch_shapes=[pltpu.VMEM((tm, N), jnp.float32)],
        compiler_params=pltpu.CompilerParams(
            dimension_semantics=("parallel", "arbitrary"),
            vmem_limit_bytes=VMEM_LIMIT),
    )(x.astype(ACT_DTYPE), w.astype(ACT_DTYPE),
      b.reshape(1, N).astype(jnp.float32),
      residual.astype(ACT_DTYPE),
      gamma.reshape(1, N).astype(jnp.float32),
      beta.reshape(1, N).astype(jnp.float32))


# --------------------------- standalone layernorm (embeddings) --------------

def _ln_kernel(x_ref, g_ref, b_ref, o_ref):
    x = x_ref[...].astype(jnp.float32)
    mu = jnp.mean(x, axis=-1, keepdims=True)
    var = jnp.mean(jnp.square(x - mu), axis=-1, keepdims=True)
    y = (x - mu) * jax.lax.rsqrt(var + LN_EPS)
    o_ref[...] = (y * g_ref[...] + b_ref[...]).astype(o_ref.dtype)


def layernorm(x, gamma, beta):
    M, H = x.shape
    tm = _tile_sublane(M, LN_ROWS_CAP)
    row_spec = pl.BlockSpec((tm, H), lambda i: (i, 0))
    vec_spec = pl.BlockSpec((1, H), lambda i: (0, 0))
    return pl.pallas_call(
        _ln_kernel,
        out_shape=jax.ShapeDtypeStruct((M, H), ACT_DTYPE),
        grid=(M // tm,),
        in_specs=[row_spec, vec_spec, vec_spec],
        out_specs=row_spec,
        compiler_params=pltpu.CompilerParams(
            dimension_semantics=("parallel",),
            vmem_limit_bytes=VMEM_LIMIT),
    )(x, gamma.reshape(1, H).astype(jnp.float32),
      beta.reshape(1, H).astype(jnp.float32))


# --------------------------- attention (flash-style over KV blocks) ---------

def _attention_kernel(q_ref, k_ref, v_ref, bias_ref, o_ref,
                      m_ref, l_ref, acc_ref, *, num_heads, head_dim, scale):
    kv = pl.program_id(2)

    @pl.when(kv == 0)
    def _():
        m_ref[...] = jnp.full_like(m_ref, NEG_INF)
        l_ref[...] = jnp.zeros_like(l_ref)
        acc_ref[...] = jnp.zeros_like(acc_ref)

    tkv = k_ref.shape[1]
    bias = bias_ref[...].reshape(1, tkv)             # additive key mask (0 / -1e9), f32
    q_scaled = q_ref[0] * scale                      # fold 1/sqrt(Dh) into Q (tq,H), once

    # TODO(synk): per-head Dh=64 contraction under-fills v6e/v7x's 256-wide MXU;
    # true head-batching would need a batched MXU dot which BlockSpec can't express here.
    for h in range(num_heads):                       # unrolled; heads batched per grid step
        sl = slice(h * head_dim, (h + 1) * head_dim)
        qh = q_scaled[:, sl]                         # (tq, Dh) bf16 (pre-scaled)
        kh = k_ref[0, :, sl]                         # (tkv, Dh) bf16
        vh = v_ref[0, :, sl]                         # (tkv, Dh) bf16
        s = jax.lax.dot_general(qh, kh, (((1,), (1,)), ((), ())),
                                preferred_element_type=jnp.float32)
        s = s + bias                                 # (tq, tkv) f32
        m_prev = m_ref[h]                            # (tq, 1)
        m_new = jnp.maximum(m_prev, jnp.max(s, axis=-1, keepdims=True))
        alpha = jnp.exp(m_prev - m_new)
        p = jnp.exp(s - m_new)
        l_ref[h] = alpha * l_ref[h] + jnp.sum(p, axis=-1, keepdims=True)
        acc_ref[:, sl] = alpha * acc_ref[:, sl] + jnp.dot(
            p.astype(vh.dtype), vh, preferred_element_type=jnp.float32)
        m_ref[h] = m_new

    @pl.when(kv == pl.num_programs(2) - 1)
    def _():
        # Normalize per head but emit ONE lane-dense (tq, H) store.
        outs = []
        for h in range(num_heads):
            sl = slice(h * head_dim, (h + 1) * head_dim)
            inv = pl.reciprocal(l_ref[h], approx=True)   # EUP slot, near-free
            outs.append(acc_ref[:, sl] * inv)
        o_ref[0] = jnp.concatenate(outs, axis=-1).astype(o_ref.dtype)


def multi_head_attention(qkv, mask_bias, num_heads):
    """qkv: (B, S, 3H) fused [Q|K|V] activation. mask_bias: (B, 1, S) f32."""
    B, S, threeH = qkv.shape
    H = threeH // 3
    Dh = H // num_heads
    scale = 1.0 / math.sqrt(Dh)
    tq = _tile_sublane(S, ATTN_TQ_CAP)
    tkv = _tile_lane(S, ATTN_TKV_CAP)
    kernel = functools.partial(_attention_kernel, num_heads=num_heads,
                               head_dim=Dh, scale=scale)
    # Q/K/V are column blocks of the fused QKV tensor (index 0/1/2 along the last
    # block axis); Q + accumulators stay resident across the KV-reduction axis.
    # Q-block grid axis gives the 2 TensorCores (v7x) independent parallel work.
    return pl.pallas_call(
        kernel,
        out_shape=jax.ShapeDtypeStruct((B, S, H), ACT_DTYPE),
        grid=(B, S // tq, S // tkv),
        in_specs=[pl.BlockSpec((1, tq, H), lambda b, qi, kv: (b, qi, 0)),
                  pl.BlockSpec((1, tkv, H), lambda b, qi, kv: (b, kv, 1)),
                  pl.BlockSpec((1, tkv, H), lambda b, qi, kv: (b, kv, 2)),
                  pl.BlockSpec((1, 1, tkv), lambda b, qi, kv: (b, 0, kv))],
        out_specs=pl.BlockSpec((1, tq, H), lambda b, qi, kv: (b, qi, 0)),
        scratch_shapes=[pltpu.VMEM((num_heads, tq, 1), jnp.float32),   # running max
                        pltpu.VMEM((num_heads, tq, 1), jnp.float32),   # running denom
                        pltpu.VMEM((tq, H), jnp.float32)],             # running numerator
        compiler_params=pltpu.CompilerParams(
            dimension_semantics=("parallel", "parallel", "arbitrary"),
            vmem_limit_bytes=VMEM_LIMIT),
    )(qkv, qkv, qkv, mask_bias)


# --------------------------- classifier + token cross-entropy ----------------

def _classifier_loss_kernel(h_ref, g_ref, lbl_ref, w1_ref, w2_ref, b_ref,
                            logits_ref, rowloss_ref, *, num_labels):
    # logits = hidden @ W[:H] + gvect @ W[H:] + b  (concat never materialized)
    acc = jnp.dot(h_ref[...], w1_ref[...], preferred_element_type=jnp.float32)
    acc = acc + jnp.dot(g_ref[...], w2_ref[...], preferred_element_type=jnp.float32)
    logits = acc + b_ref[...]                            # (tm, Np) f32, lane-dense store
    logits_ref[...] = logits.astype(logits_ref.dtype)

    # per-row masked NLL; labels < 0 are ignored (torch ignore_index semantics)
    cls_ids = jax.lax.broadcasted_iota(jnp.int32, logits.shape, 1)
    masked = jnp.where(cls_ids < num_labels, logits, NEG_INF)   # hide padded classes
    m = jnp.max(masked, axis=-1, keepdims=True)
    lse = jnp.log(jnp.sum(jnp.exp(masked - m), axis=-1, keepdims=True)) + m
    lbl = lbl_ref[...]                                          # (tm, 1) int32
    picked = jnp.sum(jnp.where(cls_ids == lbl, masked, 0.0), axis=-1, keepdims=True)
    valid = (lbl >= 0).astype(jnp.float32)
    rowloss_ref[...] = (lse - picked) * valid


def classifier_with_loss(hidden, gvect, labels, w1, w2, b, num_labels):
    M, H = hidden.shape
    G = gvect.shape[-1]
    Np = w1.shape[1]
    tm = _tile_sublane(M, TM_CAP)

    kernel = functools.partial(_classifier_loss_kernel, num_labels=num_labels)
    logits_pad, rowloss = pl.pallas_call(
        kernel,
        out_shape=(jax.ShapeDtypeStruct((M, Np), jnp.float32),
                   jax.ShapeDtypeStruct((M, 1), jnp.float32)),
        grid=(M // tm,),
        in_specs=[pl.BlockSpec((tm, H), lambda i: (i, 0)),
                  pl.BlockSpec((tm, G), lambda i: (i, 0)),
                  pl.BlockSpec((tm, 1), lambda i: (i, 0)),
                  pl.BlockSpec((H, Np), lambda i: (0, 0)),
                  pl.BlockSpec((G, Np), lambda i: (0, 0)),
                  pl.BlockSpec((1, Np), lambda i: (0, 0))],
        out_specs=(pl.BlockSpec((tm, Np), lambda i: (i, 0)),
                   pl.BlockSpec((tm, 1), lambda i: (i, 0))),
        compiler_params=pltpu.CompilerParams(
            dimension_semantics=("parallel",),
            vmem_limit_bytes=VMEM_LIMIT),
    )(hidden.astype(ACT_DTYPE), gvect.astype(ACT_DTYPE),
      labels.reshape(M, 1).astype(jnp.int32), w1, w2, b)

    # Final masked-mean reduction in JAX (keeps the kernel grid fully parallel).
    # Matches torch CrossEntropyLoss: NaN if every label is ignore_index.
    cnt = jnp.sum((labels >= 0).astype(jnp.float32))
    loss = jnp.sum(rowloss) / cnt
    return loss, logits_pad[:, :num_labels]


# --------------------------- model (glue + kernels) -------------------------

def roberta_encoder(params, input_ids, attention_mask, cfg):
    B, S = input_ids.shape
    H = cfg["hidden_size"]
    nH = cfg["num_heads"]
    pad = cfg["pad_token_id"]

    # Roberta-style position ids (create_position_ids_from_input_ids)
    not_pad = (input_ids != pad).astype(jnp.int32)
    position_ids = jnp.cumsum(not_pad, axis=1) * not_pad + pad

    emb = (params["word_embeddings"][input_ids]
           + params["position_embeddings"][position_ids]
           + params["token_type_embeddings"][0][None, None, :])
    x = layernorm(emb.reshape(B * S, H), params["emb_ln_g"], params["emb_ln_b"])
    # hidden_dropout is identity in eval mode

    mask_bias = (1.0 - attention_mask.astype(jnp.float32))[:, None, :] * NEG_INF  # (B,1,S)

    for layer in params["layers"]:
        qkv = linear(x, layer["qkv_w"], layer["qkv_b"])            # fused Q|K|V, (B*S, 3H)
        ctx = multi_head_attention(qkv.reshape(B, S, 3 * H), mask_bias, nH)
        # attn-out projection + residual + LayerNorm fused (no standalone LN round-trip)
        x = linear_residual_layernorm(ctx.reshape(B * S, H), layer["o_w"], layer["o_b"],
                                      x, layer["attn_ln_g"], layer["attn_ln_b"])

        inter = linear(x, layer["i_w"], layer["i_b"], activation="gelu")
        # FFN down projection + residual + LayerNorm fused
        x = linear_residual_layernorm(inter, layer["f_w"], layer["f_b"],
                                      x, layer["ffn_ln_g"], layer["ffn_ln_b"])

    return x                                                       # (B*S, H) bf16


def graph_roberta_token_classifier(params, input_ids, attention_mask, labels, gvect, cfg):
    B, S = input_ids.shape
    hidden = roberta_encoder(params, input_ids, attention_mask, cfg)       # (B*S, H)
    # classifier_dropout is identity in eval mode; concat(hidden, gvect) is fused
    # into the classifier kernel as a split-weight matmul (never hits HBM).
    loss, logits = classifier_with_loss(
        hidden, gvect.reshape(B * S, -1), labels.reshape(-1),
        params["cls_w1"], params["cls_w2"], params["cls_b"], cfg["num_labels"])
    return loss, logits.reshape(B, S, cfg["num_labels"])


def init_params(key, cfg):
    H = cfg["hidden_size"]
    I = cfg["intermediate_size"]
    V = cfg["vocab_size"]
    P = cfg["max_position_embeddings"]
    G = cfg["hidden_dim_2"]
    L = cfg["num_labels"]
    std = 0.02

    keys = jax.random.split(key, 4 + cfg["num_layers"])

    def norm(k, shape, dtype=jnp.float32):
        return (std * jax.random.normal(k, shape)).astype(dtype)

    params = {
        "word_embeddings": norm(keys[0], (V, H)),
        "position_embeddings": norm(keys[1], (P, H)),
        "token_type_embeddings": norm(keys[2], (1, H)),
        "emb_ln_g": jnp.ones((H,), jnp.float32),
        "emb_ln_b": jnp.zeros((H,), jnp.float32),
        "layers": [],
    }
    for li in range(cfg["num_layers"]):
        lk = jax.random.split(keys[4 + li], 6)
        # Q/K/V fused into one (H, 3H) weight; MXU-path weights stored in bf16,
        # biases / LN params stay f32.
        qkv_w = jnp.concatenate([norm(lk[0], (H, H)), norm(lk[1], (H, H)),
                                 norm(lk[2], (H, H))], axis=1)
        params["layers"].append({
            "qkv_w": qkv_w.astype(ACT_DTYPE),
            "qkv_b": jnp.zeros((3 * H,), jnp.float32),
            "o_w": norm(lk[3], (H, H), ACT_DTYPE), "o_b": jnp.zeros((H,), jnp.float32),
            "attn_ln_g": jnp.ones((H,), jnp.float32),
            "attn_ln_b": jnp.zeros((H,), jnp.float32),
            "i_w": norm(lk[4], (H, I), ACT_DTYPE), "i_b": jnp.zeros((I,), jnp.float32),
            "f_w": norm(lk[5], (I, H), ACT_DTYPE), "f_b": jnp.zeros((H,), jnp.float32),
            "ffn_ln_g": jnp.ones((H,), jnp.float32),
            "ffn_ln_b": jnp.zeros((H,), jnp.float32),
        })
    # Classifier nn.Linear(H + hidden_dim_2, num_labels): split + lane-pad to 128
    # once at init (never re-materialized per forward).
    ck = jax.random.split(keys[3], 2)
    Np = _round_up(max(L, 128), 128)
    cls_w = norm(ck[0], (H + G, L))
    params["cls_w1"] = jnp.zeros((H, Np), ACT_DTYPE).at[:, :L].set(cls_w[:H].astype(ACT_DTYPE))
    params["cls_w2"] = jnp.zeros((G, Np), ACT_DTYPE).at[:, :L].set(cls_w[H:].astype(ACT_DTYPE))
    params["cls_b"] = jnp.zeros((1, Np), jnp.float32)
    return params


if __name__ == "__main__":
    cfg = dict(
        vocab_size=50,
        hidden_size=128,          # multiple of the 128-lane width (real RoBERTa H=768 also is)
        num_heads=2,
        num_layers=2,
        intermediate_size=256,
        max_position_embeddings=40,
        hidden_dim_2=16,          # opt.hidden_dim_2 (gvect feature dim)
        num_labels=5,             # opt.num_labels
        pad_token_id=1,
    )
    key = jax.random.PRNGKey(0)
    pk, ik, gk, lk = jax.random.split(key, 4)
    params = init_params(pk, cfg)

    B, S = 2, 8
    input_ids = jax.random.randint(ik, (B, S), 3, cfg["vocab_size"], dtype=jnp.int32)
    input_ids = input_ids.at[1, -2:].set(cfg["pad_token_id"])
    attention_mask = (input_ids != cfg["pad_token_id"]).astype(jnp.float32)
    labels = jax.random.randint(lk, (B, S), 0, cfg["num_labels"], dtype=jnp.int32)
    gvect = jax.random.normal(gk, (B, S, cfg["hidden_dim_2"]), dtype=jnp.float32)

    loss, logits = graph_roberta_token_classifier(
        params, input_ids, attention_mask, labels, gvect, cfg)
    jax.block_until_ready((loss, logits))
    assert logits.shape == (B, S, cfg["num_labels"])
    assert loss.shape == ()
    assert bool(jnp.isfinite(loss))
    print("KERNEL_OK")
</pallas_src>

<mosaic_0001>
module attributes {stable_mosaic.version = 11 : i64} {
  func.func @_ln_kernel(%arg0: i32, %arg1: memref<16x128xf32, #tpu.memory_space<vmem>>, %arg2: memref<1x128xf32, #tpu.memory_space<vmem>>, %arg3: memref<1x128xf32, #tpu.memory_space<vmem>>, %arg4: memref<16x128xbf16, #tpu.memory_space<vmem>>) attributes {dimension_semantics = [#tpu.dimension_semantics<parallel>], iteration_bounds = array<i64: 1>, scalar_prefetch = 0 : i64, scratch_operands = 0 : i64, tpu.core_type = #tpu.core_type<tc>, window_params = [{transform_indices = @transform_0, window_bounds = array<i64: 16, 128>}, {pipeline_mode = #tpu.pipeline_mode<synchronous>, transform_indices = @transform_1, window_bounds = array<i64: 1, 128>}, {pipeline_mode = #tpu.pipeline_mode<synchronous>, transform_indices = @transform_2, window_bounds = array<i64: 1, 128>}, {transform_indices = @transform_3, window_bounds = array<i64: 16, 128>}]} {
    %c0 = arith.constant 0 : index
    %c0_0 = arith.constant 0 : index
    %0 = vector.load %arg1[%c0, %c0_0] : memref<16x128xf32, #tpu.memory_space<vmem>>, vector<16x128xf32>
    %cst = arith.constant dense<0.000000e+00> : vector<16xf32>
    %1 = vector.multi_reduction <add>, %0, %cst [1] : vector<16x128xf32> to vector<16xf32>
    %2 = vector.shape_cast %1 : vector<16xf32> to vector<16x1xf32>
    %cst_1 = arith.constant 1.280000e+02 : f32
    %3 = vector.broadcast %cst_1 : f32 to vector<16x1xf32>
    %4 = arith.divf %2, %3 : vector<16x1xf32>
    %5 = vector.broadcast %4 : vector<16x1xf32> to vector<16x128xf32>
    %6 = arith.subf %0, %5 : vector<16x128xf32>
    %7 = arith.mulf %6, %6 : vector<16x128xf32>
    %cst_2 = arith.constant dense<0.000000e+00> : vector<16xf32>
    %8 = vector.multi_reduction <add>, %7, %cst_2 [1] : vector<16x128xf32> to vector<16xf32>
    %9 = vector.shape_cast %8 : vector<16xf32> to vector<16x1xf32>
    %cst_3 = arith.constant 1.280000e+02 : f32
    %10 = vector.broadcast %cst_3 : f32 to vector<16x1xf32>
    %11 = arith.divf %9, %10 : vector<16x1xf32>
    %12 = vector.broadcast %4 : vector<16x1xf32> to vector<16x128xf32>
    %13 = arith.subf %0, %12 : vector<16x128xf32>
    %cst_4 = arith.constant 9.99999974E-6 : f32
    %14 = vector.broadcast %cst_4 : f32 to vector<16x1xf32>
    %15 = arith.addf %11, %14 : vector<16x1xf32>
    %16 = math.rsqrt %15 : vector<16x1xf32>
    %17 = vector.broadcast %16 : vector<16x1xf32> to vector<16x128xf32>
    %18 = arith.mulf %13, %17 : vector<16x128xf32>
    %c0_5 = arith.constant 0 : index
    %c0_6 = arith.constant 0 : index
    %19 = vector.load %arg2[%c0_5, %c0_6] : memref<1x128xf32, #tpu.memory_space<vmem>>, vector<1x128xf32>
    %20 = vector.broadcast %19 : vector<1x128xf32> to vector<16x128xf32>
    %21 = arith.mulf %18, %20 : vector<16x128xf32>
    %c0_7 = arith.constant 0 : index
    %c0_8 = arith.constant 0 : index
    %22 = vector.load %arg3[%c0_7, %c0_8] : memref<1x128xf32, #tpu.memory_space<vmem>>, vector<1x128xf32>
    %23 = vector.broadcast %22 : vector<1x128xf32> to vector<16x128xf32>
    %24 = arith.addf %21, %23 : vector<16x128xf32>
    %25 = arith.truncf %24 : vector<16x128xf32> to vector<16x128xbf16>
    %c0_9 = arith.constant 0 : index
    %c0_10 = arith.constant 0 : index
    %26 = vector.load %arg4[%c0_9, %c0_10] : memref<16x128xbf16, #tpu.memory_space<vmem>>, vector<16x128xbf16>
    tpu.vector_store %arg4[%c0_9, %c0_10], %25 {strides = array<i32>} : memref<16x128xbf16, #tpu.memory_space<vmem>>, vector<16x128xbf16>,
    return
  }
  func.func @transform_0(%arg0: i32) -> (i32, i32) {
    %c0_i32 = arith.constant 0 : i32
    %c0_i32_0 = arith.constant 0 : i32
    return %arg0, %c0_i32 : i32, i32
  }
  func.func @transform_1(%arg0: i32) -> (i32, i32) {
    %c0_i32 = arith.constant 0 : i32
    %c0_i32_0 = arith.constant 0 : i32
    %c0_i32_1 = arith.constant 0 : i32
    return %c0_i32, %c0_i32_0 : i32, i32
  }
  func.func @transform_2(%arg0: i32) -> (i32, i32) {
    %c0_i32 = arith.constant 0 : i32
    %c0_i32_0 = arith.constant 0 : i32
    %c0_i32_1 = arith.constant 0 : i32
    return %c0_i32, %c0_i32_0 : i32, i32
  }
  func.func @transform_3(%arg0: i32) -> (i32, i32) {
    %c0_i32 = arith.constant 0 : i32
    %c0_i32_0 = arith.constant 0 : i32
    return %arg0, %c0_i32 : i32, i32
  }
}

</mosaic_0001>

<llo_original>
// kernel: tpu_custom_call.1
$region0: #{tpu_custom_call.1}
  #allocation0 [shape = 'u32[]', space=smem, size = 0x4, offset = 0x4, fixed_abs, tag = 'smem constant byte address 0x4 - core index']
  #allocation1 [shape = 'u32[144,128]{1,0:T(1,128)}', space=vmem, size = 0x12000, scoped, tag = 'internal scratch']
  %s0 = inlined_call_operand.hbm [shape: f32[16,128], index: 0, kind: input, shape index: {}]
  %s1 = inlined_call_operand.vmem [shape: f32[1,128], index: 1, kind: input, shape index: {}]
  %s2 = inlined_call_operand.vmem [shape: f32[1,128], index: 2, kind: input, shape index: {}]
  %s3 = inlined_call_operand.hbm [shape: bf16[16,128], index: 3, kind: output, shape index: {}]
  %s4 = sld [smem:[#allocation0]]
  $region26: #{tpu_custom_call.1} parent=0
    _
  %s6 = ssub.s32 1, %s4
  %s7 = scalar_select 0, %s6, %s4
  $region1: #{tpu_custom_call.1} parent=0
    #allocation2 [shape = 'u8[8192]{0}', space=vmem, size = 0x2000, scoped, tag = 'input window, operand 0, single buffered']
    #allocation3 [shape = 's32[1]{0}', space=sflag, size = 0x4, scoped, tag = 'scoped memory for tpu_custom_call.1']
    #allocation4 [shape = 's32[1]{0}', space=sflag, size = 0x4, scoped, tag = 'scoped memory for tpu_custom_call.1']
    #allocation5 [shape = 'u8[4096]{0}', space=vmem, size = 0x1000, scoped, tag = 'output window, operand 0, single buffered']
    %8 = vsyncpa [#allocation3], 0
    %9 = vsyncpa [#allocation4], 0
    // Predicated region
    $region2: #{tpu_custom_call.1} parent=1 // pred_check
      _
    $region3: #{tpu_custom_call.1} parent=1 // pred_check_branch
      %11 = sbr.rel (0) target = $region5
    $region4: #{tpu_custom_call.1} parent=1 // pred_region
      %s13 = ssub.s32 256, 256
      %14 = vsyncadd [#allocation3], %s13
      %s15 = sshll.u32 [#allocation2], 4
      %s16 = int_to_ptr.vmem [resolvable:$true] %s15
      %21 = dma.hbm_to_vmem [thread:$0]  %s0, 256, %s16, [#allocation3], 128, 128, 8
    $region5: #{tpu_custom_call.1} parent=1 // pred_fallthru
      _
    // Predicated region
    $region6: #{tpu_custom_call.1} parent=1 // pred_check
      _
    $region7: #{tpu_custom_call.1} parent=1 // pred_check_branch
      %23 = sbr.rel (0) target = $region9
    $region8: #{tpu_custom_call.1} parent=1 // pred_region
      _
    $region9: #{tpu_custom_call.1} parent=1 // pred_fallthru
      _
    // Predicated region
    $region10: #{tpu_custom_call.1} parent=1 // pred_check
      _
    $region11: #{tpu_custom_call.1} parent=1 // pred_check_branch
      %25 = sbr.rel (0) target = $region13
    $region12: #{tpu_custom_call.1} parent=1 // pred_region
      _
    $region13: #{tpu_custom_call.1} parent=1 // pred_fallthru
      _
    // Predicated region
    $region14: #{tpu_custom_call.1} parent=1 // pred_check
      _
    $region15: #{tpu_custom_call.1} parent=1 // pred_check_branch
      %27 = sbr.rel (0) target = $region17
    $region16: #{tpu_custom_call.1} parent=1 // pred_region
      %28 = dma.done [#allocation3], 256
    $region17: #{tpu_custom_call.1} parent=1 // pred_fallthru
      _
    %v29 = vld [vmem:[#allocation2] sm:$0xff]
    %v30 = vld [vmem:[#allocation2 + $0x8] sm:$0xff]
    %31 = vadd.xlane.f32.xlu0 %v29
    %v32 = vpop.xlane.xlu0 %31
    %33 = vadd.xlane.f32.xlu0 %v30
    %v34 = vpop.xlane.xlu0 %33
    %v35 = vrcp.pop 128.0
    %v36 = vmul.f32 %v32, %v35
    %v37 = vmul.f32 %v34, %v35
    %v38 = vsub.f32 %v29, %v36
    %v39 = vsub.f32 %v30, %v37
    %v40 = vmul.f32 %v38, %v38
    %v41 = vmul.f32 %v39, %v39
    %42 = vadd.xlane.f32.xlu0 %v40
    %v43 = vpop.xlane.xlu0 %42
    %44 = vadd.xlane.f32.xlu0 %v41
    %v45 = vpop.xlane.xlu0 %44
    %v46 = vmul.f32 %v43, %v35
    %v47 = vmul.f32 %v45, %v35
    %v48 = vadd.f32 %v46, 1e-05
    %v49 = vadd.f32 %v47, 1e-05
    %v50 = vrsqrt.pop %v48
    %v51 = vrsqrt.pop %v49
    %v52 = vmul.f32 %v38, %v50
    %v53 = vmul.f32 %v39, %v51
    %v54 = vld [vmem:[%s1] sm:$0x1]
    %v56 = vlaneseq
    %v57 = vshrl.u32 %v56, 7
    %v58 = vsub.s32 0, %v57
    %v59 = vrot.slane %v54, %v58
    %v61 = vmul.f32 %v52, %v59
    %v62 = vmul.f32 %v53, %v59
    %v63 = vld [vmem:[%s2] sm:$0x1]
    %v65 = vlaneseq
    %v66 = vshrl.u32 %v65, 7
    %v67 = vsub.s32 0, %v66
    %v68 = vrot.slane %v63, %v67
    %v70 = vadd.f32 %v61, %v68
    %v71 = vadd.f32 %v62, %v68
    %v72 = vpack.c.bf16 %v71, %v70
    %v74 = vunpack.c.l.b16 %v72
    %v75 = vunpack.c.h.b16 %v72
    %v76 = vpack.c.b16 %v74, %v74
    %v77 = vpack.c.b16 %v75, %v75
    %80 = vst [vmem:[#allocation5] sm:$0xf] %v76
    %81 = vst [vmem:[#allocation5 + $0x4] sm:$0xf] %v77
    // Predicated region
    $region18: #{tpu_custom_call.1} parent=1 // pred_check
      _
    $region19: #{tpu_custom_call.1} parent=1 // pred_check_branch
      %83 = sbr.rel (0) target = $region21
    $region20: #{tpu_custom_call.1} parent=1 // pred_region
      %s85 = ssub.s32 128, 128
      %86 = vsyncadd [#allocation4], %s85
      %s87 = sshll.u32 [#allocation5], 4
      %s88 = int_to_ptr.vmem [resolvable:$true] %s87
      %93 = dma.vmem_to_hbm [thread:$0]  %s88, 128, %s3, [#allocation4], 64, 64, 4
    $region21: #{tpu_custom_call.1} parent=1 // pred_fallthru
      _
    // Predicated region
    $region22: #{tpu_custom_call.1} parent=1 // pred_check
      _
    $region23: #{tpu_custom_call.1} parent=1 // pred_check_branch
      %95 = sbr.rel (0) target = $region25
    $region24: #{tpu_custom_call.1} parent=1 // pred_region
      %96 = dma.done [#allocation4], 128
    $region25: #{tpu_custom_call.1} parent=1 // pred_fallthru
      _
    %97 = vsyncpa [#allocation3], 1
    %98 = vsyncpa [#allocation4], 1

</llo_original>
